<compile_context>
chip_gen: v7x
topology: tpu7x:2x2x1
jax: 0.10.0
libtpu: 0.0.40
codegen_flags: <defaults>
</compile_context>

<pallas_src>
import functools

import jax
import jax.numpy as jnp
from jax.experimental import pallas as pl
from jax.experimental.pallas import tpu as pltpu

# MXU operand dtype.  bf16 is the native MXU input type on v5e/v6e/v7x
# (v5e runs f32 as multiple bf16 passes); accumulation stays in f32.
MATMUL_DTYPE = jnp.bfloat16

# Target number of M rows per grid step (fills the MXU M dimension and
# amortizes the ~0.35 us / ~600 cycle per-grid-step pipeline overhead).
_ROWS_PER_STEP = 512


def decoder_kernel(n_res_layers, T, x_ref, w1_ref, wr1_ref, wr2_ref,
                   w3_ref, b3_ref, w4_ref, b4_ref, o_ref):
    f32 = jnp.float32
    cdt = w1_ref.dtype                      # matmul operand dtype (bf16)
    GT = x_ref.shape[0]                     # G batch elements * T rows

    # Boundary masks: the slab stacks G independent length-T sequences, so a
    # +/-1 row shift must not leak across rows where t % T == 0 / T - 1.
    # Hoisted out of the residual loop.
    row = jax.lax.broadcasted_iota(jnp.int32, (GT, 1), 0)
    not_first = (row % T) != 0
    not_last = (row % T) != (T - 1)

    def prev_rows(a):                       # a[t-1]; zero on each sequence start
        return jnp.where(not_first, pltpu.roll(a, 1, axis=0), 0.0)

    def next_rows(a):                       # a[t+1]; zero on each sequence end
        return jnp.where(not_last, pltpu.roll(a, GT - 1, axis=0), 0.0)

    # ---- Layer 1: ConvTranspose1d(k=3, s=1, p=1).  The wrapper already
    # concatenated [x[t+1], x[t], x[t-1], 1] along channels, so the three taps
    # plus the bias collapse into a single MXU matmul.
    h = jnp.dot(x_ref[...], w1_ref[...], preferred_element_type=f32)  # (GT,H) f32

    # ---- ResidualStack: weights shared across all n_res_layers copies.
    wr1 = wr1_ref[...]                      # (3H, R) bf16
    wr2 = wr2_ref[...]                      # (R, H)  bf16

    def res_layer(_, h):
        r = jnp.maximum(h, 0.0)
        rcat = jnp.concatenate(
            [prev_rows(r), r, next_rows(r)], axis=1).astype(cdt)      # (GT, 3H)
        a = jnp.dot(rcat, wr1, preferred_element_type=f32)            # (GT, R)
        a = jnp.maximum(a, 0.0).astype(cdt)
        return h + jnp.dot(a, wr2, preferred_element_type=f32)

    if n_res_layers <= 4:                   # small: full static unroll is fine
        for _ in range(n_res_layers):
            h = res_layer(0, h)
    else:                                   # large: bound live ranges
        h = jax.lax.fori_loop(0, n_res_layers, res_layer, h, unroll=2)
    h = jnp.maximum(h, 0.0)                 # final ReLU of the stack

    # ---- Layer 3: ConvTranspose1d(k=4, s=2, p=1) + ReLU, decomposed into the
    # even/odd output phases; both phases come out of one matmul:
    #   ev[t] = h[t] @ W3[1] + h[t-1] @ W3[3] + b3        (output 2t)
    #   od[t] = h[t+1] @ W3[0] + h[t] @ W3[2] + b3        (output 2t+1)
    hcat = jnp.concatenate([prev_rows(h), h, next_rows(h)], axis=1).astype(cdt)
    evod = jnp.dot(hcat, w3_ref[...], preferred_element_type=f32) + b3_ref[...]
    evod = jnp.maximum(evod, 0.0)           # (GT, 2*H2) f32 = [ev | od]

    # ---- Layer 4: ConvTranspose1d(k=4, s=2, p=1) -> 1 channel.  The 4 output
    # phases (positions 4t + r) are packed into the lane dim; one matmul over
    # the [ev, od, ev[t-1], od[t-1], ev[t+1], od[t+1]] concatenation.  Scalar
    # bias comes from SMEM.
    ucat = jnp.concatenate(
        [evod, prev_rows(evod), next_rows(evod)], axis=1).astype(cdt)
    y = jnp.dot(ucat, w4_ref[...], preferred_element_type=f32) + b4_ref[0]
    # TODO(synk): for large T, repack (GT, 4) to 128-lane rows before the
    # store to avoid masked partial stores (negligible at these sizes).
    o_ref[...] = y                          # row t, col r  ==  output 4t + r


def _pick_group_size(N, T):
    """G batch elements per grid step; G*T rows must be tiling-aligned unless
    the block covers the whole array."""
    if N * T <= _ROWS_PER_STEP:
        return N                            # whole batch in one step
    for g in range(min(N, max(1, _ROWS_PER_STEP // T)), 0, -1):
        if N % g == 0 and (g * T) % 16 == 0:
            return g
    return N                                # fallback: one full block (always legal)


def decoder_forward(x_ncl, params, n_res_layers, matmul_dtype=MATMUL_DTYPE):
    """x_ncl: (N, in_dim, T) -> (N, 1, 4T), matching the PyTorch Decoder."""
    N, Cin, T = x_ncl.shape
    H = params["w1"].shape[1]
    R = params["wr1"].shape[0]
    H2 = H // 2
    f32 = jnp.float32

    G = _pick_group_size(N, T)
    n_steps = N // G
    GT = G * T
    # TODO(synk): for very large T, add a T-tile grid axis with a 1-row halo
    # so per-step activations fit the v7x 32 MiB scoped-VMEM budget.

    # ---- Activations: channels-last, layer-1 taps + bias column pre-concat.
    x_tc = jnp.transpose(x_ncl, (0, 2, 1)).astype(f32)            # (N, T, Cin)
    zrow = jnp.zeros((N, 1, Cin), f32)
    x_next = jnp.concatenate([x_tc[:, 1:], zrow], axis=1)         # x[t+1]
    x_prev = jnp.concatenate([zrow, x_tc[:, :-1]], axis=1)        # x[t-1]
    ones = jnp.ones((N, T, 1), f32)
    x_cat = jnp.concatenate([x_next, x_tc, x_prev, ones], axis=2)
    x_cat = x_cat.reshape(N * T, 3 * Cin + 1).astype(matmul_dtype)

    # ---- Layer-1 weight: h[t] = x[t+1]@W1[0] + x[t]@W1[1] + x[t-1]@W1[2] + b1
    w1t = jnp.transpose(params["w1"], (2, 0, 1))                  # (3, Cin, H)
    w1c = jnp.concatenate(
        [w1t[0], w1t[1], w1t[2], params["b1"][None, :]], axis=0
    ).astype(matmul_dtype)                                        # (3Cin+1, H)

    # ---- Residual conv weights: a[t] = r[t-1]@Wk0 + r[t]@Wk1 + r[t+1]@Wk2
    wr1t = jnp.transpose(params["wr1"], (2, 1, 0))                # (3, H, R)
    wr1c = jnp.concatenate([wr1t[0], wr1t[1], wr1t[2]],
                           axis=0).astype(matmul_dtype)           # (3H, R)
    wr2c = params["wr2"][:, :, 0].T.astype(matmul_dtype)          # (R, H)

    # ---- Layer-3 weight, [h[t-1] | h[t] | h[t+1]] -> [ev | od] phases.
    w3t = jnp.transpose(params["w3"], (2, 0, 1))                  # (4, H, H2)
    zH = jnp.zeros((H, H2), f32)
    w3c = jnp.concatenate(
        [jnp.concatenate([w3t[3], w3t[1], zH], axis=0),           # -> ev
         jnp.concatenate([zH, w3t[2], w3t[0]], axis=0)],          # -> od
        axis=1).astype(matmul_dtype)                              # (3H, 2*H2)
    b3c = jnp.concatenate([params["b3"], params["b3"]])[None, :].astype(f32)

    # ---- Layer-4 weight: phase r of output position 4t + r from
    # [ev, od, ev[t-1], od[t-1], ev[t+1], od[t+1]].
    w4 = params["w4"][:, 0, :].astype(f32)                        # (H2, 4)
    z1 = jnp.zeros((H2,), f32)
    w4_ev = jnp.stack([w4[:, 1], w4[:, 2], w4[:, 3], z1], axis=1)   # ev[t]
    w4_od = jnp.stack([z1, w4[:, 0], w4[:, 1], w4[:, 2]], axis=1)   # od[t]
    w4_odm = jnp.stack([w4[:, 3], z1, z1, z1], axis=1)              # od[t-1]
    w4_evp = jnp.stack([z1, z1, z1, w4[:, 0]], axis=1)              # ev[t+1]
    zp = jnp.zeros((H2, 4), f32)
    w4c = jnp.concatenate([w4_ev, w4_od, zp, w4_odm, w4_evp, zp],
                          axis=0).astype(matmul_dtype)            # (6*H2, 4)
    b4s = params["b4"].astype(f32)                                # (1,) -> SMEM

    def full_spec(shape):
        return pl.BlockSpec(shape, lambda i: (0,) * len(shape))

    out = pl.pallas_call(
        functools.partial(decoder_kernel, n_res_layers, T),
        out_shape=jax.ShapeDtypeStruct((N * T, 4), f32),
        grid=(n_steps,),
        in_specs=[
            pl.BlockSpec((GT, 3 * Cin + 1), lambda i: (i, 0)),
            full_spec(w1c.shape), full_spec(wr1c.shape), full_spec(wr2c.shape),
            full_spec(w3c.shape), full_spec(b3c.shape), full_spec(w4c.shape),
            pl.BlockSpec(memory_space=pltpu.MemorySpace.SMEM),
        ],
        out_specs=pl.BlockSpec((GT, 4), lambda i: (i, 0)),
        compiler_params=pltpu.CompilerParams(
            dimension_semantics=("parallel",)),
    )(x_cat, w1c, wr1c, wr2c, w3c, b3c, w4c, b4s)

    # out[n*T + t, r] == y[n, 4t + r]  ->  (N, 1, 4T) NCL, matching PyTorch.
    return out.reshape(N, 4 * T)[:, None, :]


# ---------------- plain-JAX reference (for correctness check) ----------------
def _conv1d_ref(x, w, pad):
    return jax.lax.conv_general_dilated(
        x, w, window_strides=(1,), padding=[(pad, pad)],
        dimension_numbers=("NCH", "OIH", "NCH"),
        precision=jax.lax.Precision.HIGHEST)


def _convT1d_ref(x, w, b, k, s, ppad):
    w_oih = jnp.flip(jnp.transpose(w, (1, 0, 2)), axis=2)
    out = jax.lax.conv_general_dilated(
        x, w_oih, window_strides=(1,), padding=[(k - 1 - ppad, k - 1 - ppad)],
        lhs_dilation=(s,), dimension_numbers=("NCH", "OIH", "NCH"),
        precision=jax.lax.Precision.HIGHEST)
    return out + b[None, :, None]


def decoder_ref(x, p, n_res_layers):
    h = _convT1d_ref(x, p["w1"], p["b1"], 3, 1, 1)
    for _ in range(n_res_layers):
        r = jax.nn.relu(h)
        a = _conv1d_ref(r, p["wr1"], 1)
        h = h + _conv1d_ref(jax.nn.relu(a), p["wr2"], 0)
    h = jax.nn.relu(h)
    h = jax.nn.relu(_convT1d_ref(h, p["w3"], p["b3"], 4, 2, 1))
    return _convT1d_ref(h, p["w4"], p["b4"], 4, 2, 1)


if __name__ == "__main__":
    N, in_dim, T = 2, 4, 16
    h_dim, res_h_dim, n_res_layers = 32, 16, 2

    key = jax.random.PRNGKey(0)
    ks = jax.random.split(key, 9)
    params = {
        "w1": 0.1 * jax.random.normal(ks[0], (in_dim, h_dim, 3), jnp.float32),
        "b1": 0.1 * jax.random.normal(ks[1], (h_dim,), jnp.float32),
        "wr1": 0.1 * jax.random.normal(ks[2], (res_h_dim, h_dim, 3), jnp.float32),
        "wr2": 0.1 * jax.random.normal(ks[3], (h_dim, res_h_dim, 1), jnp.float32),
        "w3": 0.1 * jax.random.normal(ks[4], (h_dim, h_dim // 2, 4), jnp.float32),
        "b3": 0.1 * jax.random.normal(ks[5], (h_dim // 2,), jnp.float32),
        "w4": 0.1 * jax.random.normal(ks[6], (h_dim // 2, 1, 4), jnp.float32),
        "b4": 0.1 * jax.random.normal(ks[7], (1,), jnp.float32),
    }
    x = jax.random.normal(ks[8], (N, in_dim, T), jnp.float32)

    y = jax.block_until_ready(decoder_forward(x, params, n_res_layers))
    assert y.shape == (N, 1, 4 * T), y.shape

    y_ref = decoder_ref(x, params, n_res_layers)
    err = float(jnp.max(jnp.abs(y - y_ref)))
    # bf16 matmul operands (f32 accumulation) leave ~1e-2 of rounding noise
    # against the f32/HIGHEST reference; pure-f32 operands stay within 2e-3.
    tol = 2e-3 if MATMUL_DTYPE == jnp.float32 else 3e-2
    assert err < tol, f"max abs err {err} (tol {tol})"

    print("KERNEL_OK")
</pallas_src>

<mosaic_0001>
module attributes {stable_mosaic.version = 11 : i64} {
  func.func @decoder_kernel(%arg0: i32, %arg1: memref<32x13xbf16, #tpu.memory_space<vmem>>, %arg2: memref<13x32xbf16, #tpu.memory_space<vmem>>, %arg3: memref<96x16xbf16, #tpu.memory_space<vmem>>, %arg4: memref<16x32xbf16, #tpu.memory_space<vmem>>, %arg5: memref<96x32xbf16, #tpu.memory_space<vmem>>, %arg6: memref<1x32xf32, #tpu.memory_space<vmem>>, %arg7: memref<96x4xbf16, #tpu.memory_space<vmem>>, %arg8: memref<1xf32, #tpu.memory_space<smem>>, %arg9: memref<32x4xf32, #tpu.memory_space<vmem>>) attributes {dimension_semantics = [#tpu.dimension_semantics<parallel>], iteration_bounds = array<i64: 1>, scalar_prefetch = 0 : i64, scratch_operands = 0 : i64, tpu.core_type = #tpu.core_type<tc>, window_params = [{transform_indices = @transform_0, window_bounds = array<i64: 32, 13>}, {pipeline_mode = #tpu.pipeline_mode<synchronous>, transform_indices = @transform_1, window_bounds = array<i64: 13, 32>}, {pipeline_mode = #tpu.pipeline_mode<synchronous>, transform_indices = @transform_2, window_bounds = array<i64: 96, 16>}, {pipeline_mode = #tpu.pipeline_mode<synchronous>, transform_indices = @transform_3, window_bounds = array<i64: 16, 32>}, {pipeline_mode = #tpu.pipeline_mode<synchronous>, transform_indices = @transform_4, window_bounds = array<i64: 96, 32>}, {pipeline_mode = #tpu.pipeline_mode<synchronous>, transform_indices = @transform_5, window_bounds = array<i64: 1, 32>}, {pipeline_mode = #tpu.pipeline_mode<synchronous>, transform_indices = @transform_6, window_bounds = array<i64: 96, 4>}, {transform_indices = @transform_7, window_bounds = array<i64: 1>}, {transform_indices = @transform_8, window_bounds = array<i64: 32, 4>}]} {
    %0 = tpu.iota {dimensions = array<i32: 0>} : vector<32x1xi32>
    %c16_i32 = arith.constant 16 : i32
    %c0_i32 = arith.constant 0 : i32
    %1 = arith.cmpi eq, %c16_i32, %c0_i32 : i32
    %c1_i32 = arith.constant 1 : i32
    %2 = arith.select %1, %c1_i32, %c16_i32 : i32
    %3 = vector.broadcast %2 : i32 to vector<32x1xi32>
    %4 = arith.remsi %0, %3 : vector<32x1xi32>
    %c0_i32_0 = arith.constant 0 : i32
    %5 = vector.broadcast %c0_i32_0 : i32 to vector<32x1xi32>
    %6 = arith.cmpi ne, %4, %5 : vector<32x1xi32>
    %c0_i32_1 = arith.constant 0 : i32
    %7 = vector.broadcast %c0_i32_1 : i32 to vector<32x1xi32>
    %8 = arith.cmpi slt, %4, %7 : vector<32x1xi32>
    %c0_i32_2 = arith.constant 0 : i32
    %9 = arith.cmpi slt, %2, %c0_i32_2 : i32
    %10 = vector.broadcast %9 : i1 to vector<32x1xi1>
    %11 = vector.broadcast %10 : vector<32x1xi1> to vector<32x1xi1>
    %12 = arith.xori %8, %11 : vector<32x1xi1>
    %13 = arith.andi %12, %6 : vector<32x1xi1>
    %14 = vector.broadcast %2 : i32 to vector<32x1xi32>
    %15 = arith.addi %4, %14 : vector<32x1xi32>
    %16 = arith.select %13, %15, %4 : vector<32x1xi1>, vector<32x1xi32>
    %c0_i32_3 = arith.constant 0 : i32
    %17 = vector.broadcast %c0_i32_3 : i32 to vector<32x1xi32>
    %18 = arith.cmpi ne, %16, %17 : vector<32x1xi32>
    %c16_i32_4 = arith.constant 16 : i32
    %c0_i32_5 = arith.constant 0 : i32
    %19 = arith.cmpi eq, %c16_i32_4, %c0_i32_5 : i32
    %c1_i32_6 = arith.constant 1 : i32
    %20 = arith.select %19, %c1_i32_6, %c16_i32_4 : i32
    %21 = vector.broadcast %20 : i32 to vector<32x1xi32>
    %22 = arith.remsi %0, %21 : vector<32x1xi32>
    %c0_i32_7 = arith.constant 0 : i32
    %23 = vector.broadcast %c0_i32_7 : i32 to vector<32x1xi32>
    %24 = arith.cmpi ne, %22, %23 : vector<32x1xi32>
    %c0_i32_8 = arith.constant 0 : i32
    %25 = vector.broadcast %c0_i32_8 : i32 to vector<32x1xi32>
    %26 = arith.cmpi slt, %22, %25 : vector<32x1xi32>
    %c0_i32_9 = arith.constant 0 : i32
    %27 = arith.cmpi slt, %20, %c0_i32_9 : i32
    %28 = vector.broadcast %27 : i1 to vector<32x1xi1>
    %29 = vector.broadcast %28 : vector<32x1xi1> to vector<32x1xi1>
    %30 = arith.xori %26, %29 : vector<32x1xi1>
    %31 = arith.andi %30, %24 : vector<32x1xi1>
    %32 = vector.broadcast %20 : i32 to vector<32x1xi32>
    %33 = arith.addi %22, %32 : vector<32x1xi32>
    %34 = arith.select %31, %33, %22 : vector<32x1xi1>, vector<32x1xi32>
    %c15_i32 = arith.constant 15 : i32
    %35 = vector.broadcast %c15_i32 : i32 to vector<32x1xi32>
    %36 = arith.cmpi ne, %34, %35 : vector<32x1xi32>
    %c0 = arith.constant 0 : index
    %c0_10 = arith.constant 0 : index
    %37 = vector.load %arg1[%c0, %c0_10] : memref<32x13xbf16, #tpu.memory_space<vmem>>, vector<32x13xbf16>
    %c0_11 = arith.constant 0 : index
    %c0_12 = arith.constant 0 : index
    %38 = vector.load %arg2[%c0_11, %c0_12] : memref<13x32xbf16, #tpu.memory_space<vmem>>, vector<13x32xbf16>
    %cst = arith.constant dense<0.000000e+00> : vector<32x32xf32>
    %39 = tpu.matmul %37, %38, %cst {dimension_numbers = #tpu.dot_dimension_numbers<[1], [0], [0], [1], [0, 0, 1, 1], [], []>} : vector<32x13xbf16>, vector<13x32xbf16>, vector<32x32xf32> -> vector<32x32xf32>
    %c0_13 = arith.constant 0 : index
    %c0_14 = arith.constant 0 : index
    %40 = vector.load %arg3[%c0_13, %c0_14] : memref<96x16xbf16, #tpu.memory_space<vmem>>, vector<96x16xbf16>
    %c0_15 = arith.constant 0 : index
    %c0_16 = arith.constant 0 : index
    %41 = vector.load %arg4[%c0_15, %c0_16] : memref<16x32xbf16, #tpu.memory_space<vmem>>, vector<16x32xbf16>
    %cst_17 = arith.constant 0.000000e+00 : f32
    %42 = vector.broadcast %cst_17 : f32 to vector<32x32xf32>
    %43 = arith.maximumf %39, %42 : vector<32x32xf32>
    %c1_i32_18 = arith.constant 1 : i32
    %44 = tpu.dynamic_rotate %43 by %c1_i32_18 dim 0 : vector<32x32xf32>, i32 -> vector<32x32xf32>
    %cst_19 = arith.constant 0.000000e+00 : f32
    %45 = vector.shape_cast %18 : vector<32x1xi1> to vector<32x1xi1>
    %46 = vector.broadcast %45 : vector<32x1xi1> to vector<32x32xi1>
    %47 = vector.broadcast %cst_19 : f32 to vector<32x32xf32>
    %48 = arith.select %46, %44, %47 : vector<32x32xi1>, vector<32x32xf32>
    %c31_i32 = arith.constant 31 : i32
    %49 = tpu.dynamic_rotate %43 by %c31_i32 dim 0 : vector<32x32xf32>, i32 -> vector<32x32xf32>
    %cst_20 = arith.constant 0.000000e+00 : f32
    %50 = vector.shape_cast %36 : vector<32x1xi1> to vector<32x1xi1>
    %51 = vector.broadcast %50 : vector<32x1xi1> to vector<32x32xi1>
    %52 = vector.broadcast %cst_20 : f32 to vector<32x32xf32>
    %53 = arith.select %51, %49, %52 : vector<32x32xi1>, vector<32x32xf32>
    %54 = tpu.concatenate %48, %43, %53 in 1 : vector<32x32xf32>, vector<32x32xf32>, vector<32x32xf32> -> vector<32x96xf32>
    %55 = arith.truncf %54 : vector<32x96xf32> to vector<32x96xbf16>
    %cst_21 = arith.constant dense<0.000000e+00> : vector<32x16xf32>
    %56 = tpu.matmul %55, %40, %cst_21 {dimension_numbers = #tpu.dot_dimension_numbers<[1], [0], [0], [1], [0, 0, 1, 1], [], []>} : vector<32x96xbf16>, vector<96x16xbf16>, vector<32x16xf32> -> vector<32x16xf32>
    %cst_22 = arith.constant 0.000000e+00 : f32
    %57 = vector.broadcast %cst_22 : f32 to vector<32x16xf32>
    %58 = arith.maximumf %56, %57 : vector<32x16xf32>
    %59 = arith.truncf %58 : vector<32x16xf32> to vector<32x16xbf16>
    %cst_23 = arith.constant dense<0.000000e+00> : vector<32x32xf32>
    %60 = tpu.matmul %59, %41, %cst_23 {dimension_numbers = #tpu.dot_dimension_numbers<[1], [0], [0], [1], [0, 0, 1, 1], [], []>} : vector<32x16xbf16>, vector<16x32xbf16>, vector<32x32xf32> -> vector<32x32xf32>
    %61 = arith.addf %39, %60 : vector<32x32xf32>
    %cst_24 = arith.constant 0.000000e+00 : f32
    %62 = vector.broadcast %cst_24 : f32 to vector<32x32xf32>
    %63 = arith.maximumf %61, %62 : vector<32x32xf32>
    %c1_i32_25 = arith.constant 1 : i32
    %64 = tpu.dynamic_rotate %63 by %c1_i32_25 dim 0 : vector<32x32xf32>, i32 -> vector<32x32xf32>
    %cst_26 = arith.constant 0.000000e+00 : f32
    %65 = vector.shape_cast %18 : vector<32x1xi1> to vector<32x1xi1>
    %66 = vector.broadcast %65 : vector<32x1xi1> to vector<32x32xi1>
    %67 = vector.broadcast %cst_26 : f32 to vector<32x32xf32>
    %68 = arith.select %66, %64, %67 : vector<32x32xi1>, vector<32x32xf32>
    %c31_i32_27 = arith.constant 31 : i32
    %69 = tpu.dynamic_rotate %63 by %c31_i32_27 dim 0 : vector<32x32xf32>, i32 -> vector<32x32xf32>
    %cst_28 = arith.constant 0.000000e+00 : f32
    %70 = vector.shape_cast %36 : vector<32x1xi1> to vector<32x1xi1>
    %71 = vector.broadcast %70 : vector<32x1xi1> to vector<32x32xi1>
    %72 = vector.broadcast %cst_28 : f32 to vector<32x32xf32>
    %73 = arith.select %71, %69, %72 : vector<32x32xi1>, vector<32x32xf32>
    %74 = tpu.concatenate %68, %63, %73 in 1 : vector<32x32xf32>, vector<32x32xf32>, vector<32x32xf32> -> vector<32x96xf32>
    %75 = arith.truncf %74 : vector<32x96xf32> to vector<32x96xbf16>
    %cst_29 = arith.constant dense<0.000000e+00> : vector<32x16xf32>
    %76 = tpu.matmul %75, %40, %cst_29 {dimension_numbers = #tpu.dot_dimension_numbers<[1], [0], [0], [1], [0, 0, 1, 1], [], []>} : vector<32x96xbf16>, vector<96x16xbf16>, vector<32x16xf32> -> vector<32x16xf32>
    %cst_30 = arith.constant 0.000000e+00 : f32
    %77 = vector.broadcast %cst_30 : f32 to vector<32x16xf32>
    %78 = arith.maximumf %76, %77 : vector<32x16xf32>
    %79 = arith.truncf %78 : vector<32x16xf32> to vector<32x16xbf16>
    %cst_31 = arith.constant dense<0.000000e+00> : vector<32x32xf32>
    %80 = tpu.matmul %79, %41, %cst_31 {dimension_numbers = #tpu.dot_dimension_numbers<[1], [0], [0], [1], [0, 0, 1, 1], [], []>} : vector<32x16xbf16>, vector<16x32xbf16>, vector<32x32xf32> -> vector<32x32xf32>
    %81 = arith.addf %61, %80 : vector<32x32xf32>
    %cst_32 = arith.constant 0.000000e+00 : f32
    %82 = vector.broadcast %cst_32 : f32 to vector<32x32xf32>
    %83 = arith.maximumf %81, %82 : vector<32x32xf32>
    %c1_i32_33 = arith.constant 1 : i32
    %84 = tpu.dynamic_rotate %83 by %c1_i32_33 dim 0 : vector<32x32xf32>, i32 -> vector<32x32xf32>
    %cst_34 = arith.constant 0.000000e+00 : f32
    %85 = vector.shape_cast %18 : vector<32x1xi1> to vector<32x1xi1>
    %86 = vector.broadcast %85 : vector<32x1xi1> to vector<32x32xi1>
    %87 = vector.broadcast %cst_34 : f32 to vector<32x32xf32>
    %88 = arith.select %86, %84, %87 : vector<32x32xi1>, vector<32x32xf32>
    %c31_i32_35 = arith.constant 31 : i32
    %89 = tpu.dynamic_rotate %83 by %c31_i32_35 dim 0 : vector<32x32xf32>, i32 -> vector<32x32xf32>
    %cst_36 = arith.constant 0.000000e+00 : f32
    %90 = vector.shape_cast %36 : vector<32x1xi1> to vector<32x1xi1>
    %91 = vector.broadcast %90 : vector<32x1xi1> to vector<32x32xi1>
    %92 = vector.broadcast %cst_36 : f32 to vector<32x32xf32>
    %93 = arith.select %91, %89, %92 : vector<32x32xi1>, vector<32x32xf32>
    %94 = tpu.concatenate %88, %83, %93 in 1 : vector<32x32xf32>, vector<32x32xf32>, vector<32x32xf32> -> vector<32x96xf32>
    %95 = arith.truncf %94 : vector<32x96xf32> to vector<32x96xbf16>
    %c0_37 = arith.constant 0 : index
    %c0_38 = arith.constant 0 : index
    %96 = vector.load %arg5[%c0_37, %c0_38] : memref<96x32xbf16, #tpu.memory_space<vmem>>, vector<96x32xbf16>
    %cst_39 = arith.constant dense<0.000000e+00> : vector<32x32xf32>
    %97 = tpu.matmul %95, %96, %cst_39 {dimension_numbers = #tpu.dot_dimension_numbers<[1], [0], [0], [1], [0, 0, 1, 1], [], []>} : vector<32x96xbf16>, vector<96x32xbf16>, vector<32x32xf32> -> vector<32x32xf32>
    %c0_40 = arith.constant 0 : index
    %c0_41 = arith.constant 0 : index
    %98 = vector.load %arg6[%c0_40, %c0_41] : memref<1x32xf32, #tpu.memory_space<vmem>>, vector<1x32xf32>
    %99 = vector.broadcast %98 : vector<1x32xf32> to vector<32x32xf32>
    %100 = arith.addf %97, %99 : vector<32x32xf32>
    %cst_42 = arith.constant 0.000000e+00 : f32
    %101 = vector.broadcast %cst_42 : f32 to vector<32x32xf32>
    %102 = arith.maximumf %100, %101 : vector<32x32xf32>
    %c1_i32_43 = arith.constant 1 : i32
    %103 = tpu.dynamic_rotate %102 by %c1_i32_43 dim 0 : vector<32x32xf32>, i32 -> vector<32x32xf32>
    %cst_44 = arith.constant 0.000000e+00 : f32
    %104 = vector.shape_cast %18 : vector<32x1xi1> to vector<32x1xi1>
    %105 = vector.broadcast %104 : vector<32x1xi1> to vector<32x32xi1>
    %106 = vector.broadcast %cst_44 : f32 to vector<32x32xf32>
    %107 = arith.select %105, %103, %106 : vector<32x32xi1>, vector<32x32xf32>
    %c31_i32_45 = arith.constant 31 : i32
    %108 = tpu.dynamic_rotate %102 by %c31_i32_45 dim 0 : vector<32x32xf32>, i32 -> vector<32x32xf32>
    %cst_46 = arith.constant 0.000000e+00 : f32
    %109 = vector.shape_cast %36 : vector<32x1xi1> to vector<32x1xi1>
    %110 = vector.broadcast %109 : vector<32x1xi1> to vector<32x32xi1>
    %111 = vector.broadcast %cst_46 : f32 to vector<32x32xf32>
    %112 = arith.select %110, %108, %111 : vector<32x32xi1>, vector<32x32xf32>
    %113 = tpu.concatenate %102, %107, %112 in 1 : vector<32x32xf32>, vector<32x32xf32>, vector<32x32xf32> -> vector<32x96xf32>
    %114 = arith.truncf %113 : vector<32x96xf32> to vector<32x96xbf16>
    %c0_47 = arith.constant 0 : index
    %c0_48 = arith.constant 0 : index
    %115 = vector.load %arg7[%c0_47, %c0_48] : memref<96x4xbf16, #tpu.memory_space<vmem>>, vector<96x4xbf16>
    %cst_49 = arith.constant dense<0.000000e+00> : vector<32x4xf32>
    %116 = tpu.matmul %114, %115, %cst_49 {dimension_numbers = #tpu.dot_dimension_numbers<[1], [0], [0], [1], [0, 0, 1, 1], [], []>} : vector<32x96xbf16>, vector<96x4xbf16>, vector<32x4xf32> -> vector<32x4xf32>
    %c0_50 = arith.constant 0 : index
    %117 = memref.load %arg8[%c0_50] : memref<1xf32, #tpu.memory_space<smem>>
    %118 = vector.broadcast %117 : f32 to vector<32x4xf32>
    %119 = arith.addf %116, %118 : vector<32x4xf32>
    %c0_51 = arith.constant 0 : index
    %c0_52 = arith.constant 0 : index
    %120 = vector.load %arg9[%c0_51, %c0_52] : memref<32x4xf32, #tpu.memory_space<vmem>>, vector<32x4xf32>
    tpu.vector_store %arg9[%c0_51, %c0_52], %119 {strides = array<i32>} : memref<32x4xf32, #tpu.memory_space<vmem>>, vector<32x4xf32>,
    return
  }
  func.func @transform_0(%arg0: i32) -> (i32, i32) {
    %c0_i32 = arith.constant 0 : i32
    %c0_i32_0 = arith.constant 0 : i32
    return %arg0, %c0_i32 : i32, i32
  }
  func.func @transform_1(%arg0: i32) -> (i32, i32) {
    %c0_i32 = arith.constant 0 : i32
    %c0_i32_0 = arith.constant 0 : i32
    %c0_i32_1 = arith.constant 0 : i32
    return %c0_i32, %c0_i32_0 : i32, i32
  }
  func.func @transform_2(%arg0: i32) -> (i32, i32) {
    %c0_i32 = arith.constant 0 : i32
    %c0_i32_0 = arith.constant 0 : i32
    %c0_i32_1 = arith.constant 0 : i32
    return %c0_i32, %c0_i32_0 : i32, i32
  }
  func.func @transform_3(%arg0: i32) -> (i32, i32) {
    %c0_i32 = arith.constant 0 : i32
    %c0_i32_0 = arith.constant 0 : i32
    %c0_i32_1 = arith.constant 0 : i32
    return %c0_i32, %c0_i32_0 : i32, i32
  }
  func.func @transform_4(%arg0: i32) -> (i32, i32) {
    %c0_i32 = arith.constant 0 : i32
    %c0_i32_0 = arith.constant 0 : i32
    %c0_i32_1 = arith.constant 0 : i32
    return %c0_i32, %c0_i32_0 : i32, i32
  }
  func.func @transform_5(%arg0: i32) -> (i32, i32) {
    %c0_i32 = arith.constant 0 : i32
    %c0_i32_0 = arith.constant 0 : i32
    %c0_i32_1 = arith.constant 0 : i32
    return %c0_i32, %c0_i32_0 : i32, i32
  }
  func.func @transform_6(%arg0: i32) -> (i32, i32) {
    %c0_i32 = arith.constant 0 : i32
    %c0_i32_0 = arith.constant 0 : i32
    %c0_i32_1 = arith.constant 0 : i32
    return %c0_i32, %c0_i32_0 : i32, i32
  }
  func.func @transform_7(%arg0: i32) -> i32 {
    %c0_i32 = arith.constant 0 : i32
    %c0_i32_0 = arith.constant 0 : i32
    return %c0_i32 : i32
  }
  func.func @transform_8(%arg0: i32) -> (i32, i32) {
    %c0_i32 = arith.constant 0 : i32
    %c0_i32_0 = arith.constant 0 : i32
    return %arg0, %c0_i32 : i32, i32
  }
}

</mosaic_0001>

<llo_original>
// kernel: tpu_custom_call.1
$region0: #{tpu_custom_call.1}
  #allocation0 [shape = 'u32[]', space=smem, size = 0x4, offset = 0x4, fixed_abs, tag = 'smem constant byte address 0x4 - core index']
  #allocation1 [shape = 'u32[144,128]{1,0:T(1,128)}', space=vmem, size = 0x12000, scoped, tag = 'internal scratch']
  #allocation2 [shape = 'f32[1]{0:T(128)S(6)}', space=smem, size = 0x200, scoped, tag = 'scoped memory for tpu_custom_call.1']
  %s0 = inlined_call_operand.vmem [shape: bf16[32,13], index: 0, kind: input, shape index: {}]
  %s1 = inlined_call_operand.vmem [shape: bf16[13,32], index: 1, kind: input, shape index: {}]
  %s2 = inlined_call_operand.vmem [shape: bf16[96,16], index: 2, kind: input, shape index: {}]
  %s3 = inlined_call_operand.vmem [shape: bf16[16,32], index: 3, kind: input, shape index: {}]
  %s4 = inlined_call_operand.vmem [shape: bf16[96,32], index: 4, kind: input, shape index: {}]
  %s5 = inlined_call_operand.vmem [shape: f32[1,32], index: 5, kind: input, shape index: {}]
  %s6 = inlined_call_operand.vmem [shape: bf16[96,4], index: 6, kind: input, shape index: {}]
  %s7 = inlined_call_operand.<no memory space> [shape: f32[1], index: 7, kind: input, shape index: {}]
  %s8 = inlined_call_operand.vmem [shape: f32[32,4], index: 8, kind: output, shape index: {}]
  %s9 = sld [smem:[#allocation0]]
  $region42: #{tpu_custom_call.1} parent=0
    _
  %s11 = ssub.s32 1, %s9
  %s12 = scalar_select 0, %s11, %s9
  %13 = sst [smem:[#allocation2]] %s7
  // Predicated region
  $region2: #{tpu_custom_call.1} parent=0 // pred_check
    _
  $region3: #{tpu_custom_call.1} parent=0 // pred_check_branch
    %15 = sbr.rel (0) target = $region5
  $region4: #{tpu_custom_call.1} parent=0 // pred_region
    _
  $region5: #{tpu_custom_call.1} parent=0 // pred_fallthru
    _
  // Predicated region
  $region6: #{tpu_custom_call.1} parent=0 // pred_check
    _
  $region7: #{tpu_custom_call.1} parent=0 // pred_check_branch
    %17 = sbr.rel (0) target = $region9
  $region8: #{tpu_custom_call.1} parent=0 // pred_region
    _
  $region9: #{tpu_custom_call.1} parent=0 // pred_fallthru
    _
  // Predicated region
  $region10: #{tpu_custom_call.1} parent=0 // pred_check
    _
  $region11: #{tpu_custom_call.1} parent=0 // pred_check_branch
    %19 = sbr.rel (0) target = $region13
  $region12: #{tpu_custom_call.1} parent=0 // pred_region
    _
  $region13: #{tpu_custom_call.1} parent=0 // pred_fallthru
    _
  // Predicated region
  $region14: #{tpu_custom_call.1} parent=0 // pred_check
    _
  $region15: #{tpu_custom_call.1} parent=0 // pred_check_branch
    %21 = sbr.rel (0) target = $region17
  $region16: #{tpu_custom_call.1} parent=0 // pred_region
    _
  $region17: #{tpu_custom_call.1} parent=0 // pred_fallthru
    _
  // Predicated region
  $region18: #{tpu_custom_call.1} parent=0 // pred_check
    _
  $region19: #{tpu_custom_call.1} parent=0 // pred_check_branch
    %23 = sbr.rel (0) target = $region21
  $region20: #{tpu_custom_call.1} parent=0 // pred_region
    _
  $region21: #{tpu_custom_call.1} parent=0 // pred_fallthru
    _
  // Predicated region
  $region22: #{tpu_custom_call.1} parent=0 // pred_check
    _
  $region23: #{tpu_custom_call.1} parent=0 // pred_check_branch
    %25 = sbr.rel (0) target = $region25
  $region24: #{tpu_custom_call.1} parent=0 // pred_region
    _
  $region25: #{tpu_custom_call.1} parent=0 // pred_fallthru
    _
  // Predicated region
  $region26: #{tpu_custom_call.1} parent=0 // pred_check
    _
  $region27: #{tpu_custom_call.1} parent=0 // pred_check_branch
    %27 = sbr.rel (0) target = $region29
  $region28: #{tpu_custom_call.1} parent=0 // pred_region
    _
  $region29: #{tpu_custom_call.1} parent=0 // pred_fallthru
    _
  // Predicated region
  $region30: #{tpu_custom_call.1} parent=0 // pred_check
    _
  $region31: #{tpu_custom_call.1} parent=0 // pred_check_branch
    %29 = sbr.rel (0) target = $region33
  $region32: #{tpu_custom_call.1} parent=0 // pred_region
    _
  $region33: #{tpu_custom_call.1} parent=0 // pred_fallthru
    _
  %v31 = vlaneseq
  %v32 = vshrl.u32 %v31, 7
  %v33 = vadd.s32 %v32, 8
  %v34 = vadd.s32 %v32, 16
  %v35 = vadd.s32 %v32, 24
  %vm36 = vcmp.lt.s32.totalorder %v32, 0
  %v37 = vsub.s32 0, %v32
  %v38 = vsel %vm36, %v37, %v32
  %v39 = vshrl.u32 %v38, 4
  %v40 = vand.u32 %v38, 15
  %v41 = vsub.s32 0, %v40
  %v42 = vsel %vm36, %v41, %v40
  %vm43 = vcmp.lt.s32.totalorder %v33, 0
  %v44 = vsub.s32 0, %v33
  %v45 = vsel %vm43, %v44, %v33
  %v46 = vshrl.u32 %v45, 4
  %v47 = vand.u32 %v45, 15
  %v48 = vsub.s32 0, %v47
  %v49 = vsel %vm43, %v48, %v47
  %vm50 = vcmp.lt.s32.totalorder %v34, 0
  %v51 = vsub.s32 0, %v34
  %v52 = vsel %vm50, %v51, %v34
  %v53 = vshrl.u32 %v52, 4
  %v54 = vand.u32 %v52, 15
  %v55 = vsub.s32 0, %v54
  %v56 = vsel %vm50, %v55, %v54
  %vm57 = vcmp.lt.s32.totalorder %v35, 0
  %v58 = vsub.s32 0, %v35
  %v59 = vsel %vm57, %v58, %v35
  %v60 = vshrl.u32 %v59, 4
  %v61 = vand.u32 %v59, 15
  %v62 = vsub.s32 0, %v61
  %v63 = vsel %vm57, %v62, %v61
  %vm64 = vcmp.ne.s32.totalorder %v42, 0
  %vm65 = vcmp.ne.s32.totalorder %v49, 0
  %vm66 = vcmp.ne.s32.totalorder %v56, 0
  %vm67 = vcmp.ne.s32.totalorder %v63, 0
  %vm68 = vcmp.lt.s32.totalorder %v42, 0
  %vm69 = vcmp.lt.s32.totalorder %v49, 0
  %vm70 = vcmp.lt.s32.totalorder %v56, 0
  %vm71 = vcmp.lt.s32.totalorder %v63, 0
  %vm72 = vmand %vm68, %vm64
  %vm73 = vmand %vm69, %vm65
  %vm74 = vmand %vm70, %vm66
  %vm75 = vmand %vm71, %vm67
  %v76 = vadd.s32 %v42, 16
  %v77 = vadd.s32 %v49, 16
  %v78 = vadd.s32 %v56, 16
  %v79 = vadd.s32 %v63, 16
  %v80 = vsel %vm72, %v76, %v42
  %v81 = vsel %vm73, %v77, %v49
  %v82 = vsel %vm74, %v78, %v56
  %v83 = vsel %vm75, %v79, %v63
  %vm84 = vcmp.ne.s32.totalorder %v80, 0
  %vm85 = vcmp.ne.s32.totalorder %v81, 0
  %vm86 = vcmp.ne.s32.totalorder %v82, 0
  %vm87 = vcmp.ne.s32.totalorder %v83, 0
  %vm88 = vcmp.ne.s32.totalorder %v80, 15
  %vm89 = vcmp.ne.s32.totalorder %v81, 15
  %vm90 = vcmp.ne.s32.totalorder %v82, 15
  %vm91 = vcmp.ne.s32.totalorder %v83, 15
  %v92 = vld [vmem:[%s0] sm:$0xf]
  %v93 = vld [vmem:[%s0 + $0x4] sm:$0xf]
  %v94 = vld [vmem:[%s0 + $0x8] sm:$0xf]
  %v95 = vld [vmem:[%s0 + $0xc] sm:$0xf]
  %v96 = vld [vmem:[%s1] sm:$0xf]
  %v97 = vld [vmem:[%s1 + $0x4] sm:$0x7]
  %v102 = vunpack.c.l.b16 %v92
  %v103 = vunpack.c.l.b16 %v93
  %v104 = vunpack.c.l.b16 %v94
  %v105 = vunpack.c.l.b16 %v95
  %v106 = vpack.c.b16 %v103, %v102
  %v107 = vpack.c.b16 %v105, %v104
  %v110 = vunpack.c.l.b16 %v96
  %v111 = vunpack.c.l.b16 %v97
  %v112 = vpack.c.b16 %v111, %v110
  %vm113 = vcmask 105472
  %v115 = vsel %vm113, %v106, 0
  %v118 = vsel %vm113, %v107, 0
  %vm120 = vcmask 1045504
  %vm121 = vcmask 1046528
  %v122 = vsel %vm120, 4294967295, 65535
  %v123 = vsel %vm121, %v122, 0
  %v125 = vand.u32 %v112, %v123
  %127 = vmatprep.subr.bf16.mxu0 0
  %128 = vmatpush1.bf16.msra.mxu0 %v125
  %129 = vmatprep.subr.bf16.mxu0 0
  %130 = vmatpush1.bf16.msra.mxu0 0
  %131 = vmatprep.subr.bf16.mxu0 0
  %132 = vmatpush1.bf16.msra.mxu0 0
  %133 = vmatprep.subr.bf16.mxu0 0
  %134 = vmatpush1.bf16.msra.mxu0 0
  %135 = vmatprep.subr.bf16.mxu0 0
  %136 = vmatpush1.bf16.msra.mxu0 0
  %137 = vmatprep.subr.bf16.mxu0 0
  %138 = vmatpush1.bf16.msra.mxu0 0
  %139 = vmatprep.subr.bf16.mxu0 0
  %140 = vmatpush1.bf16.msra.mxu0 0
  %141 = vmatprep.subr.bf16.mxu0 0
  %142 = vmatpush1.bf16.msra.mxu0 0
  %143 = vmatprep.subr.bf16.mxu0 0
  %144 = vmatpush1.bf16.msra.mxu0 0
  %145 = vmatprep.subr.bf16.mxu0 0
  %146 = vmatpush1.bf16.msra.mxu0 0
  %147 = vmatprep.subr.bf16.mxu0 0
  %148 = vmatpush1.bf16.msra.mxu0 0
  %149 = vmatprep.subr.bf16.mxu0 0
  %150 = vmatpush1.bf16.msra.mxu0 0
  %151 = vmatprep.subr.bf16.mxu0 0
  %152 = vmatpush1.bf16.msra.mxu0 0
  %153 = vmatprep.subr.bf16.mxu0 0
  %154 = vmatpush1.bf16.msra.mxu0 0
  %155 = vmatprep.subr.bf16.mxu0 0
  %156 = vmatpush1.bf16.msra.mxu0 0
  %157 = vmatprep.subr.bf16.mxu0 0
  %158 = vmatpush1.bf16.msra.mxu0 0
  %159 = vmatprep.mubr.bf16.mxu0 0
  %160 = vmatmul.mubr.bf16.gmra.mrb[0].mxu0 %v115
  %v161 = vpop.f32.mrb[0].mxu0
  %v162 = vadd.f32 0.0, %v161
  %v163 = vpop.f32.mrb[0].mxu0
  %v164 = vpop.f32.mrb[0].mxu0
  %v165 = vadd.f32 0.0, %v164
  %v166 = vpop.f32.mrb[0].mxu0
  %167 = vmatprep.mubr.bf16.mxu0 0
  %168 = vmatmul.mubr.bf16.gmra.mrb[0].mxu0 %v118
  %v169 = vpop.f32.mrb[0].mxu0
  %v170 = vadd.f32 0.0, %v169
  %v171 = vpop.f32.mrb[0].mxu0
  %v172 = vpop.f32.mrb[0].mxu0
  %v173 = vadd.f32 0.0, %v172
  %v174 = vpop.f32.mrb[0].mxu0
  %175 = vdwg.mxu0
  %v176 = vld [vmem:[%s2] sm:$0xf]
  %v177 = vld [vmem:[%s2 + $0x4] sm:$0xf]
  %v178 = vld [vmem:[%s2 + $0x8] sm:$0xf]
  %v179 = vld [vmem:[%s2 + $0xc] sm:$0xf]
  %v180 = vld [vmem:[%s2 + $0x10] sm:$0xf]
  %v181 = vld [vmem:[%s2 + $0x14] sm:$0xf]
  %v182 = vld [vmem:[%s2 + $0x18] sm:$0xf]
  %v183 = vld [vmem:[%s2 + $0x1c] sm:$0xf]
  %v184 = vld [vmem:[%s2 + $0x20] sm:$0xf]
  %v185 = vld [vmem:[%s2 + $0x24] sm:$0xf]
  %v186 = vld [vmem:[%s2 + $0x28] sm:$0xf]
  %v187 = vld [vmem:[%s2 + $0x2c] sm:$0xf]
  %v188 = vld [vmem:[%s3] sm:$0xf]
  %v189 = vld [vmem:[%s3 + $0x4] sm:$0xf]
  %v190 = vmax.f32 %v162, 0.0
  %v191 = vmax.f32 %v165, 0.0
  %v192 = vmax.f32 %v170, 0.0
  %v193 = vmax.f32 %v173, 0.0
  %v194 = vrot.slane %v190, 7
  %v195 = vrot.slane %v191, 7
  %v196 = vrot.slane %v192, 7
  %v197 = vrot.slane %v193, 7
  %vm198 = vcmp.lt.s32.totalorder %v32, 1
  %v199 = vsel %vm198, %v196, %v197
  %v200 = vsel %vm198, %v195, %v196
  %v201 = vsel %vm198, %v194, %v195
  %v202 = vsel %vm198, %v197, %v194
  %v203 = vsel %vm84, 1, 0
  %v204 = vsel %vm85, 1, 0
  %v205 = vsel %vm86, 1, 0
  %v206 = vsel %vm87, 1, 0
  %vm207 = vcmp.eq.s32.totalorder %v203, 1
  %vm208 = vcmp.eq.s32.totalorder %v204, 1
  %vm209 = vcmp.eq.s32.totalorder %v205, 1
  %vm210 = vcmp.eq.s32.totalorder %v206, 1
  %v211 = vsel %vm207, %v202, 0.0
  %v212 = vsel %vm208, %v201, 0.0
  %v213 = vsel %vm209, %v200, 0.0
  %v214 = vsel %vm210, %v199, 0.0
  %v215 = vrot.slane %v190, 1
  %v216 = vrot.slane %v191, 1
  %v217 = vrot.slane %v192, 1
  %v218 = vrot.slane %v193, 1
  %vm219 = vcmp.lt.s32.totalorder %v32, 7
  %v220 = vsel %vm219, %v217, %v218
  %v221 = vsel %vm219, %v216, %v217
  %v222 = vsel %vm219, %v215, %v216
  %v223 = vsel %vm219, %v218, %v215
  %v224 = vsel %vm88, 1, 0
  %v225 = vsel %vm89, 1, 0
  %v226 = vsel %vm90, 1, 0
  %v227 = vsel %vm91, 1, 0
  %vm228 = vcmp.eq.s32.totalorder %v224, 1
  %vm229 = vcmp.eq.s32.totalorder %v225, 1
  %vm230 = vcmp.eq.s32.totalorder %v226, 1
  %vm231 = vcmp.eq.s32.totalorder %v227, 1
  %v232 = vsel %vm228, %v222, 0.0
  %v233 = vsel %vm229, %v221, 0.0
  %v234 = vsel %vm230, %v220, 0.0
  %v235 = vsel %vm231, %v223, 0.0
  %240 = vrot.lane.b32.xlu0 %v190, 32
  %v241 = vpop.permute.xlu0 %240
  %242 = vrot.lane.b32.xlu0 %v191, 32
  %v243 = vpop.permute.xlu0 %242
  %244 = vrot.lane.b32.xlu0 %v192, 32
  %v245 = vpop.permute.xlu0 %244
  %246 = vrot.lane.b32.xlu0 %v193, 32
  %v247 = vpop.permute.xlu0 %246
  %256 = vrot.lane.b32.xlu0 %v232, 64
  %v257 = vpop.permute.xlu0 %256
  %258 = vrot.lane.b32.xlu0 %v233, 64
  %v259 = vpop.permute.xlu0 %258
  %260 = vrot.lane.b32.xlu0 %v234, 64
  %v261 = vpop.permute.xlu0 %260
  %262 = vrot.lane.b32.xlu0 %v235, 64
  %v263 = vpop.permute.xlu0 %262
  %vm268 = vcmask 261120
  %v269 = vsel %vm268, %v211, %v241
  %v270 = vsel %vm268, %v212, %v243
  %v271 = vsel %vm268, %v213, %v245
  %v272 = vsel %vm268, %v214, %v247
  %vm273 = vcmask 523264
  %v274 = vsel %vm273, %v269, %v257
  %v275 = vsel %vm273, %v270, %v259
  %v276 = vsel %vm273, %v271, %v261
  %v277 = vsel %vm273, %v272, %v263
  %v278 = vpack.c.bf16 %v275, %v274
  %v279 = vpack.c.bf16 %v277, %v276
  %v292 = vunpack.c.l.b16 %v176
  %v293 = vunpack.c.l.b16 %v177
  %v294 = vunpack.c.l.b16 %v178
  %v295 = vunpack.c.l.b16 %v179
  %v296 = vunpack.c.l.b16 %v180
  %v297 = vunpack.c.l.b16 %v181
  %v298 = vunpack.c.l.b16 %v182
  %v299 = vunpack.c.l.b16 %v183
  %v300 = vunpack.c.l.b16 %v184
  %v301 = vunpack.c.l.b16 %v185
  %v302 = vunpack.c.l.b16 %v186
  %v303 = vunpack.c.l.b16 %v187
  %v304 = vpack.c.b16 %v293, %v292
  %v305 = vpack.c.b16 %v295, %v294
  %v306 = vpack.c.b16 %v297, %v296
  %v307 = vpack.c.b16 %v299, %v298
  %v308 = vpack.c.b16 %v301, %v300
  %v309 = vpack.c.b16 %v303, %v302
  %vm316 = vcmask 785408
  %v318 = vsel %vm316, %v278, 0
  %v321 = vsel %vm316, %v279, 0
  %323 = vmatprep.subr.bf16.mxu0 0
  %324 = vmatpush1.bf16.msra.mxu0 %v304
  %325 = vmatprep.subr.bf16.mxu0 0
  %326 = vmatpush1.bf16.msra.mxu0 %v305
  %327 = vmatprep.subr.bf16.mxu0 0
  %328 = vmatpush1.bf16.msra.mxu0 %v306
  %329 = vmatprep.subr.bf16.mxu0 0
  %330 = vmatpush1.bf16.msra.mxu0 %v307
  %331 = vmatprep.subr.bf16.mxu0 0
  %332 = vmatpush1.bf16.msra.mxu0 %v308
  %333 = vmatprep.subr.bf16.mxu0 0
  %334 = vmatpush1.bf16.msra.mxu0 %v309
  %335 = vmatprep.subr.bf16.mxu0 0
  %336 = vmatpush1.bf16.msra.mxu0 0
  %337 = vmatprep.subr.bf16.mxu0 0
  %338 = vmatpush1.bf16.msra.mxu0 0
  %339 = vmatprep.subr.bf16.mxu0 0
  %340 = vmatpush1.bf16.msra.mxu0 0
  %341 = vmatprep.subr.bf16.mxu0 0
  %342 = vmatpush1.bf16.msra.mxu0 0
  %343 = vmatprep.subr.bf16.mxu0 0
  %344 = vmatpush1.bf16.msra.mxu0 0
  %345 = vmatprep.subr.bf16.mxu0 0
  %346 = vmatpush1.bf16.msra.mxu0 0
  %347 = vmatprep.subr.bf16.mxu0 0
  %348 = vmatpush1.bf16.msra.mxu0 0
  %349 = vmatprep.subr.bf16.mxu0 0
  %350 = vmatpush1.bf16.msra.mxu0 0
  %351 = vmatprep.subr.bf16.mxu0 0
  %352 = vmatpush1.bf16.msra.mxu0 0
  %353 = vmatprep.subr.bf16.mxu0 0
  %354 = vmatpush1.bf16.msra.mxu0 0
  %355 = vmatprep.mubr.bf16.mxu0 0
  %356 = vmatmul.mubr.bf16.gmra.mrb[0].mxu0 %v318
  %v357 = vpop.f32.mrb[0].mxu0
  %v358 = vadd.f32 0.0, %v357
  %v359 = vpop.f32.mrb[0].mxu0
  %v360 = vpop.f32.mrb[0].mxu0
  %v361 = vadd.f32 0.0, %v360
  %v362 = vpop.f32.mrb[0].mxu0
  %363 = vmatprep.mubr.bf16.mxu0 0
  %364 = vmatmul.mubr.bf16.gmra.mrb[0].mxu0 %v321
  %v365 = vpop.f32.mrb[0].mxu0
  %v366 = vadd.f32 0.0, %v365
  %v367 = vpop.f32.mrb[0].mxu0
  %v368 = vpop.f32.mrb[0].mxu0
  %v369 = vadd.f32 0.0, %v368
  %v370 = vpop.f32.mrb[0].mxu0
  %371 = vdwg.mxu0
  %v372 = vmax.f32 %v358, 0.0
  %v373 = vmax.f32 %v361, 0.0
  %v374 = vmax.f32 %v366, 0.0
  %v375 = vmax.f32 %v369, 0.0
  %v376 = vpack.c.bf16 %v373, %v372
  %v377 = vpack.c.bf16 %v375, %v374
  %v380 = vunpack.c.l.b16 %v188
  %v381 = vunpack.c.l.b16 %v189
  %v382 = vpack.c.b16 %v381, %v380
  %vm384 = vcmask 130048
  %v386 = vsel %vm384, %v376, 0
  %v389 = vsel %vm384, %v377, 0
  %391 = vmatprep.subr.bf16.mxu0 0
  %392 = vmatpush1.bf16.msra.mxu0 %v382
  %393 = vmatprep.subr.bf16.mxu0 0
  %394 = vmatpush1.bf16.msra.mxu0 0
  %395 = vmatprep.subr.bf16.mxu0 0
  %396 = vmatpush1.bf16.msra.mxu0 0
  %397 = vmatprep.subr.bf16.mxu0 0
  %398 = vmatpush1.bf16.msra.mxu0 0
  %399 = vmatprep.subr.bf16.mxu0 0
  %400 = vmatpush1.bf16.msra.mxu0 0
  %401 = vmatprep.subr.bf16.mxu0 0
  %402 = vmatpush1.bf16.msra.mxu0 0
  %403 = vmatprep.subr.bf16.mxu0 0
  %404 = vmatpush1.bf16.msra.mxu0 0
  %405 = vmatprep.subr.bf16.mxu0 0
  %406 = vmatpush1.bf16.msra.mxu0 0
  %407 = vmatprep.subr.bf16.mxu0 0
  %408 = vmatpush1.bf16.msra.mxu0 0
  %409 = vmatprep.subr.bf16.mxu0 0
  %410 = vmatpush1.bf16.msra.mxu0 0
  %411 = vmatprep.subr.bf16.mxu0 0
  %412 = vmatpush1.bf16.msra.mxu0 0
  %413 = vmatprep.subr.bf16.mxu0 0
  %414 = vmatpush1.bf16.msra.mxu0 0
  %415 = vmatprep.subr.bf16.mxu0 0
  %416 = vmatpush1.bf16.msra.mxu0 0
  %417 = vmatprep.subr.bf16.mxu0 0
  %418 = vmatpush1.bf16.msra.mxu0 0
  %419 = vmatprep.subr.bf16.mxu0 0
  %420 = vmatpush1.bf16.msra.mxu0 0
  %421 = vmatprep.subr.bf16.mxu0 0
  %422 = vmatpush1.bf16.msra.mxu0 0
  %423 = vmatprep.mubr.bf16.mxu0 0
  %424 = vmatmul.mubr.bf16.gmra.mrb[0].mxu0 %v386
  %v425 = vpop.f32.mrb[0].mxu0
  %v426 = vadd.f32 0.0, %v425
  %v427 = vpop.f32.mrb[0].mxu0
  %v428 = vpop.f32.mrb[0].mxu0
  %v429 = vadd.f32 0.0, %v428
  %v430 = vpop.f32.mrb[0].mxu0
  %431 = vmatprep.mubr.bf16.mxu0 0
  %432 = vmatmul.mubr.bf16.gmra.mrb[0].mxu0 %v389
  %v433 = vpop.f32.mrb[0].mxu0
  %v434 = vadd.f32 0.0, %v433
  %v435 = vpop.f32.mrb[0].mxu0
  %v436 = vpop.f32.mrb[0].mxu0
  %v437 = vadd.f32 0.0, %v436
  %v438 = vpop.f32.mrb[0].mxu0
  %439 = vdwg.mxu0
  %v440 = vadd.f32 %v162, %v426
  %v441 = vadd.f32 %v165, %v429
  %v442 = vadd.f32 %v170, %v434
  %v443 = vadd.f32 %v173, %v437
  %v444 = vmax.f32 %v440, 0.0
  %v445 = vmax.f32 %v441, 0.0
  %v446 = vmax.f32 %v442, 0.0
  %v447 = vmax.f32 %v443, 0.0
  %v448 = vrot.slane %v444, 7
  %v449 = vrot.slane %v445, 7
  %v450 = vrot.slane %v446, 7
  %v451 = vrot.slane %v447, 7
  %v452 = vsel %vm198, %v450, %v451
  %v453 = vsel %vm198, %v449, %v450
  %v454 = vsel %vm198, %v448, %v449
  %v455 = vsel %vm198, %v451, %v448
  %v456 = vsel %vm207, %v455, 0.0
  %v457 = vsel %vm208, %v454, 0.0
  %v458 = vsel %vm209, %v453, 0.0
  %v459 = vsel %vm210, %v452, 0.0
  %v460 = vrot.slane %v444, 1
  %v461 = vrot.slane %v445, 1
  %v462 = vrot.slane %v446, 1
  %v463 = vrot.slane %v447, 1
  %v464 = vsel %vm219, %v462, %v463
  %v465 = vsel %vm219, %v461, %v462
  %v466 = vsel %vm219, %v460, %v461
  %v467 = vsel %vm219, %v463, %v460
  %v468 = vsel %vm228, %v466, 0.0
  %v469 = vsel %vm229, %v465, 0.0
  %v470 = vsel %vm230, %v464, 0.0
  %v471 = vsel %vm231, %v467, 0.0
  %476 = vrot.lane.b32.xlu0 %v444, 32
  %v477 = vpop.permute.xlu0 %476
  %478 = vrot.lane.b32.xlu0 %v445, 32
  %v479 = vpop.permute.xlu0 %478
  %480 = vrot.lane.b32.xlu0 %v446, 32
  %v481 = vpop.permute.xlu0 %480
  %482 = vrot.lane.b32.xlu0 %v447, 32
  %v483 = vpop.permute.xlu0 %482
  %492 = vrot.lane.b32.xlu0 %v468, 64
  %v493 = vpop.permute.xlu0 %492
  %494 = vrot.lane.b32.xlu0 %v469, 64
  %v495 = vpop.permute.xlu0 %494
  %496 = vrot.lane.b32.xlu0 %v470, 64
  %v497 = vpop.permute.xlu0 %496
  %498 = vrot.lane.b32.xlu0 %v471, 64
  %v499 = vpop.permute.xlu0 %498
  %v504 = vsel %vm268, %v456, %v477
  %v505 = vsel %vm268, %v457, %v479
  %v506 = vsel %vm268, %v458, %v481
  %v507 = vsel %vm268, %v459, %v483
  %v508 = vsel %vm273, %v504, %v493
  %v509 = vsel %vm273, %v505, %v495
  %v510 = vsel %vm273, %v506, %v497
  %v511 = vsel %vm273, %v507, %v499
  %v512 = vpack.c.bf16 %v509, %v508
  %v513 = vpack.c.bf16 %v511, %v510
  %v515 = vsel %vm316, %v512, 0
  %v518 = vsel %vm316, %v513, 0
  %520 = vmatprep.subr.bf16.mxu0 0
  %521 = vmatpush1.bf16.msra.mxu0 %v304
  %522 = vmatprep.subr.bf16.mxu0 0
  %523 = vmatpush1.bf16.msra.mxu0 %v305
  %524 = vmatprep.subr.bf16.mxu0 0
  %525 = vmatpush1.bf16.msra.mxu0 %v306
  %526 = vmatprep.subr.bf16.mxu0 0
  %527 = vmatpush1.bf16.msra.mxu0 %v307
  %528 = vmatprep.subr.bf16.mxu0 0
  %529 = vmatpush1.bf16.msra.mxu0 %v308
  %530 = vmatprep.subr.bf16.mxu0 0
  %531 = vmatpush1.bf16.msra.mxu0 %v309
  %532 = vmatprep.subr.bf16.mxu0 0
  %533 = vmatpush1.bf16.msra.mxu0 0
  %534 = vmatprep.subr.bf16.mxu0 0
  %535 = vmatpush1.bf16.msra.mxu0 0
  %536 = vmatprep.subr.bf16.mxu0 0
  %537 = vmatpush1.bf16.msra.mxu0 0
  %538 = vmatprep.subr.bf16.mxu0 0
  %539 = vmatpush1.bf16.msra.mxu0 0
  %540 = vmatprep.subr.bf16.mxu0 0
  %541 = vmatpush1.bf16.msra.mxu0 0
  %542 = vmatprep.subr.bf16.mxu0 0
  %543 = vmatpush1.bf16.msra.mxu0 0
  %544 = vmatprep.subr.bf16.mxu0 0
  %545 = vmatpush1.bf16.msra.mxu0 0
  %546 = vmatprep.subr.bf16.mxu0 0
  %547 = vmatpush1.bf16.msra.mxu0 0
  %548 = vmatprep.subr.bf16.mxu0 0
  %549 = vmatpush1.bf16.msra.mxu0 0
  %550 = vmatprep.subr.bf16.mxu0 0
  %551 = vmatpush1.bf16.msra.mxu0 0
  %552 = vmatprep.mubr.bf16.mxu0 0
  %553 = vmatmul.mubr.bf16.gmra.mrb[0].mxu0 %v515
  %v554 = vpop.f32.mrb[0].mxu0
  %v555 = vadd.f32 0.0, %v554
  %v556 = vpop.f32.mrb[0].mxu0
  %v557 = vpop.f32.mrb[0].mxu0
  %v558 = vadd.f32 0.0, %v557
  %v559 = vpop.f32.mrb[0].mxu0
  %560 = vmatprep.mubr.bf16.mxu0 0
  %561 = vmatmul.mubr.bf16.gmra.mrb[0].mxu0 %v518
  %v562 = vpop.f32.mrb[0].mxu0
  %v563 = vadd.f32 0.0, %v562
  %v564 = vpop.f32.mrb[0].mxu0
  %v565 = vpop.f32.mrb[0].mxu0
  %v566 = vadd.f32 0.0, %v565
  %v567 = vpop.f32.mrb[0].mxu0
  %568 = vdwg.mxu0
  %v569 = vmax.f32 %v555, 0.0
  %v570 = vmax.f32 %v558, 0.0
  %v571 = vmax.f32 %v563, 0.0
  %v572 = vmax.f32 %v566, 0.0
  %v573 = vpack.c.bf16 %v570, %v569
  %v574 = vpack.c.bf16 %v572, %v571
  %v576 = vsel %vm384, %v573, 0
  %v579 = vsel %vm384, %v574, 0
  %581 = vmatprep.subr.bf16.mxu0 0
  %582 = vmatpush1.bf16.msra.mxu0 %v382
  %583 = vmatprep.subr.bf16.mxu0 0
  %584 = vmatpush1.bf16.msra.mxu0 0
  %585 = vmatprep.subr.bf16.mxu0 0
  %586 = vmatpush1.bf16.msra.mxu0 0
  %587 = vmatprep.subr.bf16.mxu0 0
  %588 = vmatpush1.bf16.msra.mxu0 0
  %589 = vmatprep.subr.bf16.mxu0 0
  %590 = vmatpush1.bf16.msra.mxu0 0
  %591 = vmatprep.subr.bf16.mxu0 0
  %592 = vmatpush1.bf16.msra.mxu0 0
  %593 = vmatprep.subr.bf16.mxu0 0
  %594 = vmatpush1.bf16.msra.mxu0 0
  %595 = vmatprep.subr.bf16.mxu0 0
  %596 = vmatpush1.bf16.msra.mxu0 0
  %597 = vmatprep.subr.bf16.mxu0 0
  %598 = vmatpush1.bf16.msra.mxu0 0
  %599 = vmatprep.subr.bf16.mxu0 0
  %600 = vmatpush1.bf16.msra.mxu0 0
  %601 = vmatprep.subr.bf16.mxu0 0
  %602 = vmatpush1.bf16.msra.mxu0 0
  %603 = vmatprep.subr.bf16.mxu0 0
  %604 = vmatpush1.bf16.msra.mxu0 0
  %605 = vmatprep.subr.bf16.mxu0 0
  %606 = vmatpush1.bf16.msra.mxu0 0
  %607 = vmatprep.subr.bf16.mxu0 0
  %608 = vmatpush1.bf16.msra.mxu0 0
  %609 = vmatprep.subr.bf16.mxu0 0
  %610 = vmatpush1.bf16.msra.mxu0 0
  %611 = vmatprep.subr.bf16.mxu0 0
  %612 = vmatpush1.bf16.msra.mxu0 0
  %613 = vmatprep.mubr.bf16.mxu0 0
  %614 = vmatmul.mubr.bf16.gmra.mrb[0].mxu0 %v576
  %v615 = vpop.f32.mrb[0].mxu0
  %v616 = vadd.f32 0.0, %v615
  %v617 = vpop.f32.mrb[0].mxu0
  %v618 = vpop.f32.mrb[0].mxu0
  %v619 = vadd.f32 0.0, %v618
  %v620 = vpop.f32.mrb[0].mxu0
  %621 = vmatprep.mubr.bf16.mxu0 0
  %622 = vmatmul.mubr.bf16.gmra.mrb[0].mxu0 %v579
  %v623 = vpop.f32.mrb[0].mxu0
  %v624 = vadd.f32 0.0, %v623
  %v625 = vpop.f32.mrb[0].mxu0
  %v626 = vpop.f32.mrb[0].mxu0
  %v627 = vadd.f32 0.0, %v626
  %v628 = vpop.f32.mrb[0].mxu0
  %629 = vdwg.mxu0
  %v630 = vadd.f32 %v440, %v616
  %v631 = vadd.f32 %v441, %v619
  %v632 = vadd.f32 %v442, %v624
  %v633 = vadd.f32 %v443, %v627
  %v634 = vmax.f32 %v630, 0.0
  %v635 = vmax.f32 %v631, 0.0
  %v636 = vmax.f32 %v632, 0.0
  %v637 = vmax.f32 %v633, 0.0
  %v638 = vrot.slane %v634, 7
  %v639 = vrot.slane %v635, 7
  %v640 = vrot.slane %v636, 7
  %v641 = vrot.slane %v637, 7
  %v642 = vsel %vm198, %v640, %v641
  %v643 = vsel %vm198, %v639, %v640
  %v644 = vsel %vm198, %v638, %v639
  %v645 = vsel %vm198, %v641, %v638
  %v646 = vsel %vm207, %v645, 0.0
  %v647 = vsel %vm208, %v644, 0.0
  %v648 = vsel %vm209, %v643, 0.0
  %v649 = vsel %vm210, %v642, 0.0
  %v650 = vrot.slane %v634, 1
  %v651 = vrot.slane %v635, 1
  %v652 = vrot.slane %v636, 1
  %v653 = vrot.slane %v637, 1
  %v654 = vsel %vm219, %v652, %v653
  %v655 = vsel %vm219, %v651, %v652
  %v656 = vsel %vm219, %v650, %v651
  %v657 = vsel %vm219, %v653, %v650
  %v658 = vsel %vm228, %v656, 0.0
  %v659 = vsel %vm229, %v655, 0.0
  %v660 = vsel %vm230, %v654, 0.0
  %v661 = vsel %vm231, %v657, 0.0
  %666 = vrot.lane.b32.xlu0 %v634, 32
  %v667 = vpop.permute.xlu0 %666
  %668 = vrot.lane.b32.xlu0 %v635, 32
  %v669 = vpop.permute.xlu0 %668
  %670 = vrot.lane.b32.xlu0 %v636, 32
  %v671 = vpop.permute.xlu0 %670
  %672 = vrot.lane.b32.xlu0 %v637, 32
  %v673 = vpop.permute.xlu0 %672
  %682 = vrot.lane.b32.xlu0 %v658, 64
  %v683 = vpop.permute.xlu0 %682
  %684 = vrot.lane.b32.xlu0 %v659, 64
  %v685 = vpop.permute.xlu0 %684
  %686 = vrot.lane.b32.xlu0 %v660, 64
  %v687 = vpop.permute.xlu0 %686
  %688 = vrot.lane.b32.xlu0 %v661, 64
  %v689 = vpop.permute.xlu0 %688
  %v694 = vsel %vm268, %v646, %v667
  %v695 = vsel %vm268, %v647, %v669
  %v696 = vsel %vm268, %v648, %v671
  %v697 = vsel %vm268, %v649, %v673
  %v698 = vsel %vm273, %v694, %v683
  %v699 = vsel %vm273, %v695, %v685
  %v700 = vsel %vm273, %v696, %v687
  %v701 = vsel %vm273, %v697, %v689
  %v702 = vpack.c.bf16 %v699, %v698
  %v703 = vpack.c.bf16 %v701, %v700
  %v704 = vld [vmem:[%s4] sm:$0xf]
  %v705 = vld [vmem:[%s4 + $0x4] sm:$0xf]
  %v706 = vld [vmem:[%s4 + $0x8] sm:$0xf]
  %v707 = vld [vmem:[%s4 + $0xc] sm:$0xf]
  %v708 = vld [vmem:[%s4 + $0x10] sm:$0xf]
  %v709 = vld [vmem:[%s4 + $0x14] sm:$0xf]
  %v710 = vld [vmem:[%s4 + $0x18] sm:$0xf]
  %v711 = vld [vmem:[%s4 + $0x1c] sm:$0xf]
  %v712 = vld [vmem:[%s4 + $0x20] sm:$0xf]
  %v713 = vld [vmem:[%s4 + $0x24] sm:$0xf]
  %v714 = vld [vmem:[%s4 + $0x28] sm:$0xf]
  %v715 = vld [vmem:[%s4 + $0x2c] sm:$0xf]
  %v716 = vld [vmem:[%s5] sm:$0x1]
  %v718 = vlaneseq
  %v719 = vshrl.u32 %v718, 7
  %v720 = vsub.s32 0, %v719
  %v721 = vrot.slane %v716, %v720
  %v735 = vunpack.c.l.b16 %v704
  %v736 = vunpack.c.l.b16 %v705
  %v737 = vunpack.c.l.b16 %v706
  %v738 = vunpack.c.l.b16 %v707
  %v739 = vunpack.c.l.b16 %v708
  %v740 = vunpack.c.l.b16 %v709
  %v741 = vunpack.c.l.b16 %v710
  %v742 = vunpack.c.l.b16 %v711
  %v743 = vunpack.c.l.b16 %v712
  %v744 = vunpack.c.l.b16 %v713
  %v745 = vunpack.c.l.b16 %v714
  %v746 = vunpack.c.l.b16 %v715
  %v747 = vpack.c.b16 %v736, %v735
  %v748 = vpack.c.b16 %v738, %v737
  %v749 = vpack.c.b16 %v740, %v739
  %v750 = vpack.c.b16 %v742, %v741
  %v751 = vpack.c.b16 %v744, %v743
  %v752 = vpack.c.b16 %v746, %v745
  %v760 = vsel %vm316, %v702, 0
  %v763 = vsel %vm316, %v703, 0
  %765 = vmatprep.subr.bf16.mxu0 0
  %766 = vmatpush1.bf16.msra.mxu0 %v747
  %767 = vmatprep.subr.bf16.mxu0 0
  %768 = vmatpush1.bf16.msra.mxu0 %v748
  %769 = vmatprep.subr.bf16.mxu0 0
  %770 = vmatpush1.bf16.msra.mxu0 %v749
  %771 = vmatprep.subr.bf16.mxu0 0
  %772 = vmatpush1.bf16.msra.mxu0 %v750
  %773 = vmatprep.subr.bf16.mxu0 0
  %774 = vmatpush1.bf16.msra.mxu0 %v751
  %775 = vmatprep.subr.bf16.mxu0 0
  %776 = vmatpush1.bf16.msra.mxu0 %v752
  %777 = vmatprep.subr.bf16.mxu0 0
  %778 = vmatpush1.bf16.msra.mxu0 0
  %779 = vmatprep.subr.bf16.mxu0 0
  %780 = vmatpush1.bf16.msra.mxu0 0
  %781 = vmatprep.subr.bf16.mxu0 0
  %782 = vmatpush1.bf16.msra.mxu0 0
  %783 = vmatprep.subr.bf16.mxu0 0
  %784 = vmatpush1.bf16.msra.mxu0 0
  %785 = vmatprep.subr.bf16.mxu0 0
  %786 = vmatpush1.bf16.msra.mxu0 0
  %787 = vmatprep.subr.bf16.mxu0 0
  %788 = vmatpush1.bf16.msra.mxu0 0
  %789 = vmatprep.subr.bf16.mxu0 0
  %790 = vmatpush1.bf16.msra.mxu0 0
  %791 = vmatprep.subr.bf16.mxu0 0
  %792 = vmatpush1.bf16.msra.mxu0 0
  %793 = vmatprep.subr.bf16.mxu0 0
  %794 = vmatpush1.bf16.msra.mxu0 0
  %795 = vmatprep.subr.bf16.mxu0 0
  %796 = vmatpush1.bf16.msra.mxu0 0
  %797 = vmatprep.mubr.bf16.mxu0 0
  %798 = vmatmul.mubr.bf16.gmra.mrb[0].mxu0 %v760
  %v799 = vpop.f32.mrb[0].mxu0
  %v800 = vadd.f32 %v721, %v799
  %v801 = vpop.f32.mrb[0].mxu0
  %v802 = vpop.f32.mrb[0].mxu0
  %v803 = vadd.f32 %v721, %v802
  %v804 = vpop.f32.mrb[0].mxu0
  %805 = vmatprep.mubr.bf16.mxu0 0
  %806 = vmatmul.mubr.bf16.gmra.mrb[0].mxu0 %v763
  %v807 = vpop.f32.mrb[0].mxu0
  %v808 = vadd.f32 %v721, %v807
  %v809 = vpop.f32.mrb[0].mxu0
  %v810 = vpop.f32.mrb[0].mxu0
  %v811 = vadd.f32 %v721, %v810
  %v812 = vpop.f32.mrb[0].mxu0
  %813 = vdwg.mxu0
  %v814 = vmax.f32 %v800, 0.0
  %v815 = vmax.f32 %v803, 0.0
  %v816 = vmax.f32 %v808, 0.0
  %v817 = vmax.f32 %v811, 0.0
  %v818 = vrot.slane %v814, 7
  %v819 = vrot.slane %v815, 7
  %v820 = vrot.slane %v816, 7
  %v821 = vrot.slane %v817, 7
  %v822 = vsel %vm198, %v820, %v821
  %v823 = vsel %vm198, %v819, %v820
  %v824 = vsel %vm198, %v818, %v819
  %v825 = vsel %vm198, %v821, %v818
  %v826 = vsel %vm207, %v825, 0.0
  %v827 = vsel %vm208, %v824, 0.0
  %v828 = vsel %vm209, %v823, 0.0
  %v829 = vsel %vm210, %v822, 0.0
  %v830 = vrot.slane %v814, 1
  %v831 = vrot.slane %v815, 1
  %v832 = vrot.slane %v816, 1
  %v833 = vrot.slane %v817, 1
  %v834 = vsel %vm219, %v832, %v833
  %v835 = vsel %vm219, %v831, %v832
  %v836 = vsel %vm219, %v830, %v831
  %v837 = vsel %vm219, %v833, %v830
  %v838 = vsel %vm228, %v836, 0.0
  %v839 = vsel %vm229, %v835, 0.0
  %v840 = vsel %vm230, %v834, 0.0
  %v841 = vsel %vm231, %v837, 0.0
  %846 = vrot.lane.b32.xlu0 %v826, 32
  %v847 = vpop.permute.xlu0 %846
  %848 = vrot.lane.b32.xlu0 %v827, 32
  %v849 = vpop.permute.xlu0 %848
  %850 = vrot.lane.b32.xlu0 %v828, 32
  %v851 = vpop.permute.xlu0 %850
  %852 = vrot.lane.b32.xlu0 %v829, 32
  %v853 = vpop.permute.xlu0 %852
  %862 = vrot.lane.b32.xlu0 %v838, 64
  %v863 = vpop.permute.xlu0 %862
  %864 = vrot.lane.b32.xlu0 %v839, 64
  %v865 = vpop.permute.xlu0 %864
  %866 = vrot.lane.b32.xlu0 %v840, 64
  %v867 = vpop.permute.xlu0 %866
  %868 = vrot.lane.b32.xlu0 %v841, 64
  %v869 = vpop.permute.xlu0 %868
  %v874 = vsel %vm268, %v814, %v847
  %v875 = vsel %vm268, %v815, %v849
  %v876 = vsel %vm268, %v816, %v851
  %v877 = vsel %vm268, %v817, %v853
  %v878 = vsel %vm273, %v874, %v863
  %v879 = vsel %vm273, %v875, %v865
  %v880 = vsel %vm273, %v876, %v867
  %v881 = vsel %vm273, %v877, %v869
  %v882 = vpack.c.bf16 %v879, %v878
  %v883 = vpack.c.bf16 %v881, %v880
  %v884 = vld [vmem:[%s6] sm:$0xf]
  %v885 = vld [vmem:[%s6 + $0x4] sm:$0xf]
  %v886 = vld [vmem:[%s6 + $0x8] sm:$0xf]
  %v887 = vld [vmem:[%s6 + $0xc] sm:$0xf]
  %v888 = vld [vmem:[%s6 + $0x10] sm:$0xf]
  %v889 = vld [vmem:[%s6 + $0x14] sm:$0xf]
  %v890 = vld [vmem:[%s6 + $0x18] sm:$0xf]
  %v891 = vld [vmem:[%s6 + $0x1c] sm:$0xf]
  %v892 = vld [vmem:[%s6 + $0x20] sm:$0xf]
  %v893 = vld [vmem:[%s6 + $0x24] sm:$0xf]
  %v894 = vld [vmem:[%s6 + $0x28] sm:$0xf]
  %v895 = vld [vmem:[%s6 + $0x2c] sm:$0xf]
  %s896 = sld [smem:[#allocation2]]
  %v897 = vstv %s896
  %v910 = vunpack.c.l.b16 %v884
  %v911 = vunpack.c.l.b16 %v885
  %v912 = vunpack.c.l.b16 %v886
  %v913 = vunpack.c.l.b16 %v887
  %v914 = vunpack.c.l.b16 %v888
  %v915 = vunpack.c.l.b16 %v889
  %v916 = vunpack.c.l.b16 %v890
  %v917 = vunpack.c.l.b16 %v891
  %v918 = vunpack.c.l.b16 %v892
  %v919 = vunpack.c.l.b16 %v893
  %v920 = vunpack.c.l.b16 %v894
  %v921 = vunpack.c.l.b16 %v895
  %v922 = vpack.c.b16 %v911, %v910
  %v923 = vpack.c.b16 %v913, %v912
  %v924 = vpack.c.b16 %v915, %v914
  %v925 = vpack.c.b16 %v917, %v916
  %v926 = vpack.c.b16 %v919, %v918
  %v927 = vpack.c.b16 %v921, %v920
  %v935 = vsel %vm316, %v882, 0
  %v938 = vsel %vm316, %v883, 0
  %940 = vmatprep.subr.bf16.mxu0 0
  %941 = vmatpush1.bf16.msra.mxu0 %v922
  %942 = vmatprep.subr.bf16.mxu0 0
  %943 = vmatpush1.bf16.msra.mxu0 %v923
  %944 = vmatprep.subr.bf16.mxu0 0
  %945 = vmatpush1.bf16.msra.mxu0 %v924
  %946 = vmatprep.subr.bf16.mxu0 0
  %947 = vmatpush1.bf16.msra.mxu0 %v925
  %948 = vmatprep.subr.bf16.mxu0 0
  %949 = vmatpush1.bf16.msra.mxu0 %v926
  %950 = vmatprep.subr.bf16.mxu0 0
  %951 = vmatpush1.bf16.msra.mxu0 %v927
  %952 = vmatprep.subr.bf16.mxu0 0
  %953 = vmatpush1.bf16.msra.mxu0 0
  %954 = vmatprep.subr.bf16.mxu0 0
  %955 = vmatpush1.bf16.msra.mxu0 0
  %956 = vmatprep.subr.bf16.mxu0 0
  %957 = vmatpush1.bf16.msra.mxu0 0
  %958 = vmatprep.subr.bf16.mxu0 0
  %959 = vmatpush1.bf16.msra.mxu0 0
  %960 = vmatprep.subr.bf16.mxu0 0
  %961 = vmatpush1.bf16.msra.mxu0 0
  %962 = vmatprep.subr.bf16.mxu0 0
  %963 = vmatpush1.bf16.msra.mxu0 0
  %964 = vmatprep.subr.bf16.mxu0 0
  %965 = vmatpush1.bf16.msra.mxu0 0
  %966 = vmatprep.subr.bf16.mxu0 0
  %967 = vmatpush1.bf16.msra.mxu0 0
  %968 = vmatprep.subr.bf16.mxu0 0
  %969 = vmatpush1.bf16.msra.mxu0 0
  %970 = vmatprep.subr.bf16.mxu0 0
  %971 = vmatpush1.bf16.msra.mxu0 0
  %972 = vmatprep.mubr.bf16.mxu0 0
  %973 = vmatmul.mubr.bf16.gmra.mrb[0].mxu0 %v935
  %v974 = vpop.f32.mrb[0].mxu0
  %v975 = vadd.f32 %v897, %v974
  %v976 = vpop.f32.mrb[0].mxu0
  %v977 = vpop.f32.mrb[0].mxu0
  %v978 = vadd.f32 %v897, %v977
  %v979 = vpop.f32.mrb[0].mxu0
  %980 = vmatprep.mubr.bf16.mxu0 0
  %981 = vmatmul.mubr.bf16.gmra.mrb[0].mxu0 %v938
  %v982 = vpop.f32.mrb[0].mxu0
  %v983 = vadd.f32 %v897, %v982
  %v984 = vpop.f32.mrb[0].mxu0
  %v985 = vpop.f32.mrb[0].mxu0
  %v986 = vadd.f32 %v897, %v985
  %v987 = vpop.f32.mrb[0].mxu0
  %988 = vdwg.mxu0
  %vm989 = vcmask 31744
  %990 = vst.msk [vmem:[%s8] sm:$0xff] %vm989, %v975
  %991 = vst.msk [vmem:[%s8 + $0x8] sm:$0xff] %vm989, %v978
  %992 = vst.msk [vmem:[%s8 + $0x10] sm:$0xff] %vm989, %v983
  %993 = vst.msk [vmem:[%s8 + $0x18] sm:$0xff] %vm989, %v986
  // Predicated region
  $region34: #{tpu_custom_call.1} parent=0 // pred_check
    _
  $region35: #{tpu_custom_call.1} parent=0 // pred_check_branch
    %995 = sbr.rel (0) target = $region37
  $region36: #{tpu_custom_call.1} parent=0 // pred_region
    _
  $region37: #{tpu_custom_call.1} parent=0 // pred_fallthru
    _
  // Predicated region
  $region38: #{tpu_custom_call.1} parent=0 // pred_check
    _
  $region39: #{tpu_custom_call.1} parent=0 // pred_check_branch
    %997 = sbr.rel (0) target = $region41
  $region40: #{tpu_custom_call.1} parent=0 // pred_region
    _
  $region41: #{tpu_custom_call.1} parent=0 // pred_fallthru
    _

</llo_original>
